<compile_context>
chip_gen: v5e
topology: v5e:2x2
jax: 0.10.0
libtpu: 0.0.40
codegen_flags: <defaults>
</compile_context>

<pallas_src>
import functools

import jax
import jax.numpy as jnp
from jax.experimental import pallas as pl
from jax.experimental.pallas import tpu as pltpu


def _round_up(n, m):
    return ((n + m - 1) // m) * m


def _sublane_pack(dtype):
    itemsize = jnp.dtype(dtype).itemsize
    if itemsize >= 4:
        return 8
    if itemsize == 2:
        return 16
    return 32


def _rmsnorm_affine_kernel(x_ref, w_ref, o_ref, *, eps):
    # x_ref: (tm, D) row tile; w_ref: (1, D) resident weight; o_ref: (tm, D)
    xf = x_ref[...].astype(jnp.float32)               # x.float()
    ms = jnp.mean(xf * xf, axis=-1, keepdims=True)    # per-row mean of squares
    wf = w_ref[...].astype(jnp.float32)
    # Fused f32 epilogue, single cast to the output dtype.
    o_ref[...] = (xf * jax.lax.rsqrt(ms + eps) * wf).astype(o_ref.dtype)


def _rmsnorm_kernel(x_ref, o_ref, *, eps):
    xf = x_ref[...].astype(jnp.float32)
    ms = jnp.mean(xf * xf, axis=-1, keepdims=True)
    o_ref[...] = (xf * jax.lax.rsqrt(ms + eps)).astype(o_ref.dtype)


def _pick_tiling(M, D, in_dtype, out_dtype):
    """Bandwidth-driven row tile + explicit scoped-VMEM limit."""
    in_item = jnp.dtype(in_dtype).itemsize
    out_item = jnp.dtype(out_dtype).itemsize
    pack = _sublane_pack(in_dtype)

    # Target ~2 MiB of input per grid step so the ~0.35 us per-step overhead
    # is amortized against HBM time on all generations.
    target_block_bytes = 2 << 20
    tm = max(pack, target_block_bytes // max(D * in_item, 1))

    # Live VMEM per row: double-buffered input + double-buffered output
    # (+ an f32 upcast temporary when the input is sub-32-bit). Keep the
    # total <= ~24 MiB so v7x (64 MiB physical / 32 MiB scoped) stays happy.
    per_row = 2 * D * in_item + 2 * D * out_item
    if in_item < 4:
        per_row += D * 4
    budget = 24 << 20
    tm = min(tm, max(pack, budget // per_row))

    tm = _round_up(tm, pack)
    tm = min(tm, _round_up(M, pack))                  # never larger than padded M

    # Keep at least 2 grid steps (v7x megacore splits "parallel" axes across
    # its 2 TensorCores) as long as each step still moves >= ~512 KiB.
    half = _round_up(pl.cdiv(M, 2), pack)
    if half * D * in_item >= (512 << 10):
        tm = min(tm, half)

    est = tm * per_row + D * 4                        # + resident weight
    vmem_limit = int(min(48 << 20, max(32 << 20, 2 * est)))
    return tm, vmem_limit


@functools.partial(jax.jit, static_argnames=("eps",))
def rms_norm(x, weight=None, *, eps=1e-6):
    """RMSNorm over the last dim. x: (..., D); weight: (D,) or None."""
    orig_shape = x.shape
    D = orig_shape[-1]
    x2d = x.reshape(-1, D)                            # (M, D), reduction axis last
    M = x2d.shape[0]

    # Torch's `output.type_as(x) * weight` promotes when dtypes differ.
    out_dtype = x.dtype if weight is None else jnp.promote_types(x.dtype, weight.dtype)

    tm, vmem_limit = _pick_tiling(M, D, x.dtype, out_dtype)
    # Ragged last block: OOB reads are garbage rows (never written), OOB
    # writes are masked -> no extra pad / slice HBM passes in the wrapper.
    grid = (pl.cdiv(M, tm),)

    row_spec = pl.BlockSpec((tm, D), lambda i: (i, 0))
    compiler_params = pltpu.CompilerParams(
        dimension_semantics=("parallel",),
        vmem_limit_bytes=vmem_limit,
    )

    if weight is not None:
        w2d = weight.reshape(1, D)
        out2d = pl.pallas_call(
            functools.partial(_rmsnorm_affine_kernel, eps=eps),
            out_shape=jax.ShapeDtypeStruct((M, D), out_dtype),
            grid_spec=pltpu.PrefetchScalarGridSpec(
                num_scalar_prefetch=0,
                grid=grid,
                in_specs=[
                    row_spec,                                    # x row tile
                    pl.BlockSpec((1, D), lambda i: (0, 0),       # resident weight
                                 pipeline_mode=pl.Buffered(1)),
                ],
                out_specs=row_spec,
            ),
            compiler_params=compiler_params,
        )(x2d, w2d)
    else:
        out2d = pl.pallas_call(
            functools.partial(_rmsnorm_kernel, eps=eps),
            out_shape=jax.ShapeDtypeStruct((M, D), out_dtype),
            grid_spec=pltpu.PrefetchScalarGridSpec(
                num_scalar_prefetch=0,
                grid=grid,
                in_specs=[row_spec],
                out_specs=row_spec,
            ),
            compiler_params=compiler_params,
        )(x2d)

    return out2d.reshape(orig_shape)


def _reference(x, weight, eps):
    # Pure-JAX mirror of the PyTorch forward.
    xf = x.astype(jnp.float32)
    ms = jnp.mean(xf * xf, axis=-1, keepdims=True)
    out = (xf * jax.lax.rsqrt(ms + eps)).astype(x.dtype)
    if weight is not None:
        out = out * weight
    return out


if __name__ == "__main__":
    eps = 1e-6
    key = jax.random.PRNGKey(0)
    kx, kw, kx2 = jax.random.split(key, 3)

    # Small shapes consistent with the module; dim=128 -> lane-dense loads/stores.
    batch, seq, dim = 2, 8, 128
    x = jax.random.normal(kx, (batch, seq, dim), dtype=jnp.float32)
    weight = 1.0 + 0.1 * jax.random.normal(kw, (dim,), dtype=jnp.float32)

    # 1) f32, elementwise_affine=True.
    out = jax.block_until_ready(rms_norm(x, weight, eps=eps))
    ref = _reference(x, weight, eps)
    assert out.shape == x.shape and out.dtype == x.dtype
    assert jnp.allclose(out, ref, atol=1e-5, rtol=1e-5), "f32 affine mismatch"

    # 2) f32, elementwise_affine=False.
    out_na = jax.block_until_ready(rms_norm(x, None, eps=eps))
    ref_na = _reference(x, None, eps)
    assert jnp.allclose(out_na, ref_na, atol=1e-5, rtol=1e-5), "f32 no-affine mismatch"

    # 3) Ragged row count (M = 3*7 = 21): exercises the cdiv grid with a
    #    masked last block instead of a wrapper pad+slice.
    x_rag = jax.random.normal(kx2, (3, 7, dim), dtype=jnp.float32)
    out_rag = jax.block_until_ready(rms_norm(x_rag, weight, eps=eps))
    ref_rag = _reference(x_rag, weight, eps)
    assert jnp.allclose(out_rag, ref_rag, atol=1e-5, rtol=1e-5), "ragged mismatch"

    # 4) bf16 input with f32 weight: fused f32 epilogue, torch-style promotion.
    x_bf = x.astype(jnp.bfloat16)
    out_bf = jax.block_until_ready(rms_norm(x_bf, weight, eps=eps))
    ref_bf = _reference(x_bf, weight, eps)
    assert out_bf.dtype == jnp.float32
    assert jnp.allclose(out_bf, ref_bf.astype(jnp.float32),
                        atol=2e-2, rtol=2e-2), "bf16 affine mismatch"

    print("KERNEL_OK")
</pallas_src>

<mosaic_0001>
module attributes {stable_mosaic.version = 11 : i64} {
  func.func @_rmsnorm_affine_kernel(%arg0: i32, %arg1: memref<16x128xf32, #tpu.memory_space<vmem>>, %arg2: memref<1x128xf32, #tpu.memory_space<vmem>>, %arg3: memref<16x128xf32, #tpu.memory_space<vmem>>) attributes {dimension_semantics = [#tpu.dimension_semantics<parallel>], iteration_bounds = array<i64: 1>, scalar_prefetch = 0 : i64, scratch_operands = 0 : i64, tpu.core_type = #tpu.core_type<tc>, window_params = [{transform_indices = @transform_0, window_bounds = array<i64: 16, 128>}, {pipeline_mode = #tpu.pipeline_mode<synchronous>, transform_indices = @transform_1, window_bounds = array<i64: 1, 128>}, {transform_indices = @transform_2, window_bounds = array<i64: 16, 128>}]} {
    %c0 = arith.constant 0 : index
    %c0_0 = arith.constant 0 : index
    %0 = vector.load %arg1[%c0, %c0_0] : memref<16x128xf32, #tpu.memory_space<vmem>>, vector<16x128xf32>
    %1 = arith.mulf %0, %0 : vector<16x128xf32>
    %cst = arith.constant dense<0.000000e+00> : vector<16xf32>
    %2 = vector.multi_reduction <add>, %1, %cst [1] : vector<16x128xf32> to vector<16xf32>
    %3 = vector.shape_cast %2 : vector<16xf32> to vector<16x1xf32>
    %cst_1 = arith.constant 1.280000e+02 : f32
    %4 = vector.broadcast %cst_1 : f32 to vector<16x1xf32>
    %5 = arith.divf %3, %4 : vector<16x1xf32>
    %c0_2 = arith.constant 0 : index
    %c0_3 = arith.constant 0 : index
    %6 = vector.load %arg2[%c0_2, %c0_3] : memref<1x128xf32, #tpu.memory_space<vmem>>, vector<1x128xf32>
    %cst_4 = arith.constant 9.99999997E-7 : f32
    %7 = vector.broadcast %cst_4 : f32 to vector<16x1xf32>
    %8 = arith.addf %5, %7 : vector<16x1xf32>
    %9 = math.rsqrt %8 : vector<16x1xf32>
    %10 = vector.broadcast %9 : vector<16x1xf32> to vector<16x128xf32>
    %11 = arith.mulf %0, %10 : vector<16x128xf32>
    %12 = vector.broadcast %6 : vector<1x128xf32> to vector<16x128xf32>
    %13 = arith.mulf %11, %12 : vector<16x128xf32>
    %c0_5 = arith.constant 0 : index
    %c0_6 = arith.constant 0 : index
    %14 = vector.load %arg3[%c0_5, %c0_6] : memref<16x128xf32, #tpu.memory_space<vmem>>, vector<16x128xf32>
    tpu.vector_store %arg3[%c0_5, %c0_6], %13 {strides = array<i32>} : memref<16x128xf32, #tpu.memory_space<vmem>>, vector<16x128xf32>,
    return
  }
  func.func @transform_0(%arg0: i32) -> (i32, i32) {
    %c0_i32 = arith.constant 0 : i32
    %c0_i32_0 = arith.constant 0 : i32
    return %arg0, %c0_i32 : i32, i32
  }
  func.func @transform_1(%arg0: i32) -> (i32, i32) {
    %c0_i32 = arith.constant 0 : i32
    %c0_i32_0 = arith.constant 0 : i32
    %c0_i32_1 = arith.constant 0 : i32
    return %c0_i32, %c0_i32_0 : i32, i32
  }
  func.func @transform_2(%arg0: i32) -> (i32, i32) {
    %c0_i32 = arith.constant 0 : i32
    %c0_i32_0 = arith.constant 0 : i32
    return %arg0, %c0_i32 : i32, i32
  }
}

</mosaic_0001>

<llo_original>
// kernel: rms_norm.1
$region0: #{rms_norm.1}
  #allocation0 [shape = 'u32[]', space=smem, size = 0x4, offset = 0x4, fixed_abs, tag = 'smem constant byte address 0x4 - core index']
  #allocation1 [shape = 'u32[72,128]{1,0:T(1,128)}', space=vmem, size = 0x9000, scoped, tag = 'internal scratch']
  %s0 = inlined_call_operand.hbm [shape: f32[16,128], index: 0, kind: input, shape index: {}]
  %s1 = inlined_call_operand.vmem [shape: f32[1,128], index: 1, kind: input, shape index: {}]
  %s2 = inlined_call_operand.hbm [shape: f32[16,128], index: 2, kind: output, shape index: {}]
  %s3 = sld [smem:[#allocation0]]
  $region22: #{rms_norm.1} parent=0
    _
  %s5 = ssub.s32 1, %s3
  %s6 = scalar_select 0, %s5, %s3
  $region1: #{rms_norm.1} parent=0
    #allocation2 [shape = 'u8[8192]{0}', space=vmem, size = 0x2000, scoped, tag = 'input window, operand 0, single buffered']
    #allocation3 [shape = 's32[1]{0}', space=sflag, size = 0x4, scoped, tag = 'scoped memory for rms_norm.1']
    #allocation4 [shape = 's32[1]{0}', space=sflag, size = 0x4, scoped, tag = 'scoped memory for rms_norm.1']
    #allocation5 [shape = 'u8[8192]{0}', space=vmem, size = 0x2000, scoped, tag = 'output window, operand 0, single buffered']
    %7 = vsyncpa [#allocation3], 0
    %8 = vsyncpa [#allocation4], 0
    // Predicated region
    $region2: #{rms_norm.1} parent=1 // pred_check
      _
    $region3: #{rms_norm.1} parent=1 // pred_check_branch
      %10 = sbr.rel (0) target = $region5
    $region4: #{rms_norm.1} parent=1 // pred_region
      %12 = vsyncadd [#allocation3], 0
      %s13 = sshll.u32 %s0, 4
      %s14 = int_to_ptr.hbm [resolvable:$true] %s13
      %s15 = sshll.u32 [#allocation2], 4
      %s16 = int_to_ptr.vmem [resolvable:$true] %s15
      %21 = dma.hbm_to_vmem [thread:$0]  %s14, 256, %s16, [#allocation3], 128, 128, 8
    $region5: #{rms_norm.1} parent=1 // pred_fallthru
      _
    // Predicated region
    $region6: #{rms_norm.1} parent=1 // pred_check
      _
    $region7: #{rms_norm.1} parent=1 // pred_check_branch
      %23 = sbr.rel (0) target = $region9
    $region8: #{rms_norm.1} parent=1 // pred_region
      _
    $region9: #{rms_norm.1} parent=1 // pred_fallthru
      _
    // Predicated region
    $region10: #{rms_norm.1} parent=1 // pred_check
      _
    $region11: #{rms_norm.1} parent=1 // pred_check_branch
      %25 = sbr.rel (0) target = $region13
    $region12: #{rms_norm.1} parent=1 // pred_region
      %27 = dma.done [#allocation3], 256
    $region13: #{rms_norm.1} parent=1 // pred_fallthru
      _
    %v28 = vld [vmem:[#allocation2] sm:$0xff]
    %v29 = vld [vmem:[#allocation2 + $0x8] sm:$0xff]
    %v30 = vmul.f32 %v28, %v28
    %v31 = vmul.f32 %v29, %v29
    %32 = vadd.xlane.f32.xlu0 %v30
    %v33 = vpop.xlane.xlu0 %32
    %34 = vadd.xlane.f32.xlu0 %v31
    %v35 = vpop.xlane.xlu0 %34
    %v36 = vrcp.pop 128.0
    %v37 = vmul.f32 128.0, %v36
    %v38 = vsub.f32 1.0, %v37
    %v39 = vmul.f32 %v36, %v38
    %v40 = vadd.f32 %v36, %v39
    %vm41 = vweird.f32 %v36
    %v42 = vsel %vm41, %v36, %v40
    %v43 = vmul.f32 %v33, %v42
    %v44 = vmul.f32 %v35, %v42
    %v45 = vld [vmem:[%s1] sm:$0x1]
    %v46 = vadd.f32 %v43, 1e-06
    %v47 = vadd.f32 %v44, 1e-06
    %v48 = vrsqrt.pop %v46
    %v49 = vmul.f32 %v48, %v46
    %v50 = vmul.f32 %v49, %v48
    %v51 = vmul.f32 0.5, %v50
    %v52 = vsub.f32 1.5, %v51
    %v53 = vmul.f32 %v48, %v52
    %vm54 = vweird.f32 %v46
    %vm55 = vweird.f32 %v48
    %vm56 = vmor %vm54, %vm55
    %v57 = vsel %vm56, %v48, %v53
    %v58 = vrsqrt.pop %v47
    %v59 = vmul.f32 %v58, %v47
    %v60 = vmul.f32 %v59, %v58
    %v61 = vmul.f32 0.5, %v60
    %v62 = vsub.f32 1.5, %v61
    %v63 = vmul.f32 %v58, %v62
    %vm64 = vweird.f32 %v47
    %vm65 = vweird.f32 %v58
    %vm66 = vmor %vm64, %vm65
    %v67 = vsel %vm66, %v58, %v63
    %v68 = vmul.f32 %v28, %v57
    %v69 = vmul.f32 %v29, %v67
    %v71 = vperm.slane %v45, 0
    %v73 = vmul.f32 %v68, %v71
    %v74 = vmul.f32 %v69, %v71
    %75 = vst [vmem:[#allocation5] sm:$0xff] %v73
    %76 = vst [vmem:[#allocation5 + $0x8] sm:$0xff] %v74
    // Predicated region
    $region14: #{rms_norm.1} parent=1 // pred_check
      _
    $region15: #{rms_norm.1} parent=1 // pred_check_branch
      %78 = sbr.rel (0) target = $region17
    $region16: #{rms_norm.1} parent=1 // pred_region
      %80 = vsyncadd [#allocation4], 0
      %s81 = sshll.u32 [#allocation5], 4
      %s82 = int_to_ptr.vmem [resolvable:$true] %s81
      %s83 = sshll.u32 %s2, 4
      %s84 = int_to_ptr.hbm [resolvable:$true] %s83
      %89 = dma.vmem_to_hbm [thread:$0]  %s82, 256, %s84, [#allocation4], 128, 128, 8
    $region17: #{rms_norm.1} parent=1 // pred_fallthru
      _
    // Predicated region
    $region18: #{rms_norm.1} parent=1 // pred_check
      _
    $region19: #{rms_norm.1} parent=1 // pred_check_branch
      %91 = sbr.rel (0) target = $region21
    $region20: #{rms_norm.1} parent=1 // pred_region
      %93 = dma.done [#allocation4], 256
    $region21: #{rms_norm.1} parent=1 // pred_fallthru
      _
    %94 = vsyncpa [#allocation3], 1
    %95 = vsyncpa [#allocation4], 1

</llo_original>
